<compile_context>
chip_gen: v7x
topology: tpu7x:2x2x1
jax: 0.10.0
libtpu: 0.0.40
codegen_flags: <defaults>
</compile_context>

<pallas_src>
import math
import functools

import jax
import jax.numpy as jnp
import numpy as np
from jax.experimental import pallas as pl
from jax.experimental.pallas import tpu as pltpu


# ----------------------------------------------------------------------------
# hardware-aware budgets
# ----------------------------------------------------------------------------
def _vmem_budget_bytes():
    """Scoped-VMEM limit from physical capacity, with headroom for pipelining."""
    cap = None
    try:
        info = pltpu.get_tpu_info()
        cap = getattr(info, "vmem_capacity_bytes", None)
    except Exception:
        cap = None
    if not cap:
        cap = 64 * 1024 * 1024          # conservative fallback (v7x per-TC VMEM)
    return min((int(cap) * 3) // 4, 96 * 1024 * 1024)


_VMEM_LIMIT = _vmem_budget_bytes()
# 128-MiB parts (v5e/v6e) -> bigger tiles; 64-MiB v7x -> smaller tiles.
_BIG_VMEM = _VMEM_LIMIT >= 64 * 1024 * 1024


def _pick_tile(dim, target, align):
    """Largest tile <= target that divides `dim` and is a multiple of `align`,
    falling back to the full dimension (always a legal Pallas block)."""
    if dim <= target:
        return dim
    t = (target // align) * align
    while t >= align:
        if dim % t == 0:
            return t
        t -= align
    return dim


# ----------------------------------------------------------------------------
# Kernel 1: tiled linear projection  y = x @ W + b   (bf16 operands, f32 acc)
# ----------------------------------------------------------------------------
def _linear_kernel(x_ref, w_ref, b_ref, o_ref, acc_ref):
    @pl.when(pl.program_id(2) == 0)
    def _init():
        acc_ref[...] = jnp.zeros_like(acc_ref)

    acc_ref[...] += jnp.dot(
        x_ref[...], w_ref[...], preferred_element_type=jnp.float32
    )

    @pl.when(pl.program_id(2) == pl.num_programs(2) - 1)
    def _finalize():
        o_ref[...] = (acc_ref[...] + b_ref[...].astype(jnp.float32)).astype(o_ref.dtype)


def pallas_linear(x, w, b, *, out_dtype=None,
                  tm_target=None, tn_target=None, tk_target=512):
    """x: (M, K), w: (K, N), b: (N,) -> (M, N) in `out_dtype`."""
    M, K = x.shape
    Kw, N = w.shape
    assert K == Kw
    if out_dtype is None:
        out_dtype = x.dtype
    if tm_target is None:
        tm_target = 512 if _BIG_VMEM else 256
    if tn_target is None:
        tn_target = 512 if _BIG_VMEM else 256

    tm = _pick_tile(M, tm_target, 8)
    tn = _pick_tile(N, tn_target, 128)
    tk = _pick_tile(K, tk_target, 128)
    grid = (M // tm, N // tn, K // tk)

    return pl.pallas_call(
        _linear_kernel,
        grid=grid,
        in_specs=[
            pl.BlockSpec((tm, tk), lambda i, j, k: (i, k)),
            pl.BlockSpec((tk, tn), lambda i, j, k: (k, j)),
            pl.BlockSpec((1, tn), lambda i, j, k: (0, j)),
        ],
        out_specs=pl.BlockSpec((tm, tn), lambda i, j, k: (i, j)),
        out_shape=jax.ShapeDtypeStruct((M, N), out_dtype),
        scratch_shapes=[pltpu.VMEM((tm, tn), jnp.float32)],
        compiler_params=pltpu.CompilerParams(
            dimension_semantics=("parallel", "parallel", "arbitrary"),
            vmem_limit_bytes=_VMEM_LIMIT,
        ),
    )(x, w, b.reshape(1, N))


# ----------------------------------------------------------------------------
# Kernel 2: flash-style multi-head attention (all heads per block, kv-tiled)
#   q is pre-scaled by 1/sqrt(d_k) (folded into Wq/bq by the wrapper).
#   Output is lane-dense (tq, H*Dk) per block -> one unmasked store per tile.
# ----------------------------------------------------------------------------
def _flash_attn_kernel(*refs, has_bias):
    if has_bias:
        q_ref, k_ref, v_ref, bias_ref, o_ref, m_sc, l_sc, acc_sc = refs
    else:
        q_ref, k_ref, v_ref, o_ref, m_sc, l_sc, acc_sc = refs
        bias_ref = None

    kv = pl.program_id(2)

    @pl.when(kv == 0)
    def _init():
        m_sc[...] = jnp.full_like(m_sc, -1e30)
        l_sc[...] = jnp.zeros_like(l_sc)
        acc_sc[...] = jnp.zeros_like(acc_sc)

    q = q_ref[...]  # (tq, H, Dk) bf16, pre-scaled
    k = k_ref[...]  # (tk, H, Dk) bf16
    v = v_ref[...]  # (tk, H, Dk) bf16

    # scores[h, i, j] = sum_d q[i, h, d] * k[j, h, d]   (bf16 MXU, f32 acc)
    s = jax.lax.dot_general(
        q, k,
        dimension_numbers=(((2,), (2,)), ((1,), (1,))),
        preferred_element_type=jnp.float32,
    )  # (H, tq, tk)

    if bias_ref is not None:
        # additive mask bias (0 or -1e30), broadcast over heads
        # TODO(synk): clean/fully-masked kv-block skipping via scalar-prefetched
        #             per-block flags is not implemented.
        s = s + bias_ref[...].astype(jnp.float32)[None, :, :]

    m_prev = m_sc[...]                                        # (H, tq, 1)
    m_new = jnp.maximum(m_prev, jnp.max(s, axis=-1, keepdims=True))
    alpha = jnp.exp(m_prev - m_new)                           # (H, tq, 1)
    p = jnp.exp(s - m_new)                                    # (H, tq, tk) f32

    l_sc[...] = alpha * l_sc[...] + jnp.sum(p, axis=-1, keepdims=True)

    # pv[h, i, d] = sum_j p[h, i, j] * v[j, h, d]   (bf16 operands, f32 acc)
    pv = jax.lax.dot_general(
        p.astype(v.dtype), v,
        dimension_numbers=(((2,), (0,)), ((0,), (1,))),
        preferred_element_type=jnp.float32,
    )  # (H, tq, Dk)

    acc_sc[...] = alpha * acc_sc[...] + pv
    m_sc[...] = m_new

    @pl.when(kv == pl.num_programs(2) - 1)
    def _finalize():
        # exact reciprocal: once per q tile, negligible cost, better accuracy
        inv_l = pl.reciprocal(l_sc[...], approx=False)        # (H, tq, 1)
        ctx = acc_sc[...] * inv_l                              # (H, tq, Dk) f32
        n_heads, tq, d_k = ctx.shape
        # single lane-dense store: (H, tq, Dk) -> (tq, H*Dk)
        slab = jnp.transpose(ctx, (1, 0, 2)).reshape(tq, n_heads * d_k)
        o_ref[...] = slab.astype(o_ref.dtype)


def pallas_flash_attention(q, k, v, bias, *, tq_target=None, tk_target=256):
    """q: (Sq, B, H, Dk), k/v: (Sk, B, H, Dk), bias: None or (B, Sq, Sk) additive.
    Returns the context in lane-dense layout (Sq, B, H*Dk)."""
    Sq, B, H, Dk = q.shape
    Sk = k.shape[0]

    if tq_target is None:
        tq_target = 512 if _BIG_VMEM else 256
    # Megacore coverage: if B == 1 keep >= 2 q blocks so the parallel qi axis
    # can be sharded across both TensorCores (v7x).
    if B == 1 and Sq >= 16:
        tq_target = min(tq_target, max(8, Sq // 2))

    tq = _pick_tile(Sq, tq_target, 8)
    tk = _pick_tile(Sk, tk_target, 128)
    grid = (B, Sq // tq, Sk // tk)

    q_spec = pl.BlockSpec((tq, None, H, Dk), lambda b, qi, kv: (qi, b, 0, 0))
    kv_spec = pl.BlockSpec((tk, None, H, Dk), lambda b, qi, kv: (kv, b, 0, 0))
    out_spec = pl.BlockSpec((tq, None, H * Dk), lambda b, qi, kv: (qi, b, 0))

    in_specs = [q_spec, kv_spec, kv_spec]
    inputs = [q, k, v]
    if bias is not None:
        in_specs.append(
            pl.BlockSpec((None, tq, tk), lambda b, qi, kv: (b, qi, kv))
        )
        inputs.append(bias)

    kernel = functools.partial(_flash_attn_kernel, has_bias=bias is not None)
    return pl.pallas_call(
        kernel,
        grid=grid,
        in_specs=in_specs,
        out_specs=out_spec,
        out_shape=jax.ShapeDtypeStruct((Sq, B, H * Dk), q.dtype),
        scratch_shapes=[
            pltpu.VMEM((H, tq, 1), jnp.float32),   # running max
            pltpu.VMEM((H, tq, 1), jnp.float32),   # running sum
            pltpu.VMEM((H, tq, Dk), jnp.float32),  # output accumulator
        ],
        compiler_params=pltpu.CompilerParams(
            dimension_semantics=("parallel", "parallel", "arbitrary"),
            vmem_limit_bytes=_VMEM_LIMIT,
        ),
    )(*inputs)


# ----------------------------------------------------------------------------
# Full MultiHeadAttention forward (wrapper does only free reshapes / casts).
# ----------------------------------------------------------------------------
def multi_head_attention(params, *, query, key, value, mask=None):
    """
    query/key/value: (seq, batch, d_model); mask: (seq_q|1, seq_k, batch|1).
    Returns (seq_q, batch, d_model) in float32.
    """
    heads = params["heads"]
    d_k = params["d_k"]
    scale = 1.0 / math.sqrt(d_k)
    hd = heads * d_k

    Sq, B, Dm = query.shape
    Sk = key.shape[0]

    cdt = jnp.bfloat16  # compute dtype for activations / weights (f32 acc inside)
    # Fold the softmax scale into the query projection (zero kernel cost).
    wq = (params["wq"] * scale).astype(cdt)
    bq = params["bq"] * scale
    wk = params["wk"].astype(cdt)
    wv = params["wv"].astype(cdt)

    if (query is key) and (key is value):
        # Self-attention fast path: one fused QKV GEMM (activations read once).
        x2d = query.reshape(Sq * B, Dm).astype(cdt)
        w_qkv = jnp.concatenate([wq, wk, wv], axis=1)              # (Dm, 3*H*Dk)
        b_qkv = jnp.concatenate([bq, params["bk"], params["bv"]])
        qkv = pallas_linear(x2d, w_qkv, b_qkv, out_dtype=cdt)      # (Sq*B, 3*H*Dk)
        q = qkv[:, :hd].reshape(Sq, B, heads, d_k)
        k = qkv[:, hd:2 * hd].reshape(Sq, B, heads, d_k)
        v = qkv[:, 2 * hd:].reshape(Sq, B, heads, d_k)
    else:
        def project(x, w, b):
            S = x.shape[0]
            y = pallas_linear(x.reshape(S * B, Dm).astype(cdt), w, b, out_dtype=cdt)
            return y.reshape(S, B, heads, d_k)                     # free reshape

        q = project(query, wq, bq)
        k = project(key, wk, params["bk"])
        v = project(value, wv, params["bv"])

    if mask is None:
        bias = None
    else:
        # prepare_mask: (Sq|1, Sk, B|1) -> compact additive bf16 bias built
        # directly in (B, Sq, Sk) (transpose the small source mask first).
        m = jnp.transpose(mask, (2, 0, 1))          # (B|1, Sq|1, Sk)
        m = jnp.broadcast_to(m, (B, Sq, Sk))
        bias = jnp.where(m == 0, -1e30, 0.0).astype(jnp.bfloat16)

    ctx = pallas_flash_attention(q, k, v, bias)      # (Sq, B, H*Dk) bf16
    ctx2d = ctx.reshape(Sq * B, hd)                  # free reshape

    out = pallas_linear(ctx2d, params["wo"].astype(cdt), params["bo"],
                        out_dtype=jnp.float32)
    return out.reshape(Sq, B, Dm)


# ----------------------------------------------------------------------------
# Pure-JAX f32 reference (correctness check only)
# ----------------------------------------------------------------------------
def reference_mha(params, *, query, key, value, mask=None):
    heads, d_k = params["heads"], params["d_k"]
    scale = 1.0 / math.sqrt(d_k)
    Sq, B, Dm = query.shape
    Sk = key.shape[0]

    def proj(x, w, b):
        return (x @ w + b).reshape(x.shape[0], x.shape[1], heads, d_k)

    q = proj(query, params["wq"], params["bq"])
    k = proj(key, params["wk"], params["bk"])
    v = proj(value, params["wv"], params["bv"])

    scores = jnp.einsum("ibhd,jbhd->ijbh", q, k) * scale
    if mask is not None:
        m = jnp.broadcast_to(mask, (Sq, Sk, B))[..., None]
        scores = jnp.where(m == 0, -1e30, scores)
    attn = jax.nn.softmax(scores, axis=1)
    x = jnp.einsum("ijbh,jbhd->ibhd", attn, v).reshape(Sq, B, heads * d_k)
    return x @ params["wo"] + params["bo"]


# ----------------------------------------------------------------------------
def init_params(rng, d_model, heads):
    d_k = d_model // heads
    keys = jax.random.split(rng, 8)
    lim = 1.0 / math.sqrt(d_model)

    def unif(kk, shape):
        return jax.random.uniform(kk, shape, jnp.float32, -lim, lim)

    return {
        "heads": heads,
        "d_k": d_k,
        "wq": unif(keys[0], (d_model, heads * d_k)),
        "bq": unif(keys[1], (heads * d_k,)),
        "wk": unif(keys[2], (d_model, heads * d_k)),
        "bk": unif(keys[3], (heads * d_k,)),
        "wv": unif(keys[4], (d_model, heads * d_k)),
        "bv": unif(keys[5], (heads * d_k,)),
        "wo": unif(keys[6], (d_model, d_model)),
        "bo": unif(keys[7], (d_model,)),
    }


if __name__ == "__main__":
    # small shapes consistent with the module's (seq, batch, d_model) convention
    seq_len, batch, d_model, heads = 8, 2, 32, 4

    root = jax.random.PRNGKey(0)
    k_q, k_k, k_v, k_p = jax.random.split(root, 4)

    query = jax.random.normal(k_q, (seq_len, batch, d_model), jnp.float32)
    key = jax.random.normal(k_k, (seq_len, batch, d_model), jnp.float32)
    value = jax.random.normal(k_v, (seq_len, batch, d_model), jnp.float32)
    mask = jnp.ones((seq_len, seq_len, batch), jnp.float32)

    params = init_params(k_p, d_model, heads)

    # bf16 compute path -> looser tolerance than the old f32 test
    RTOL, ATOL = 2e-2, 2e-2

    # 1) cross-attention with mask
    out = multi_head_attention(params, query=query, key=key, value=value, mask=mask)
    out = jax.block_until_ready(out)
    ref = reference_mha(params, query=query, key=key, value=value, mask=mask)
    np.testing.assert_allclose(np.asarray(out), np.asarray(ref), rtol=RTOL, atol=ATOL)

    # 2) cross-attention without mask (bias-free kernel variant)
    out_nm = multi_head_attention(params, query=query, key=key, value=value, mask=None)
    out_nm = jax.block_until_ready(out_nm)
    ref_nm = reference_mha(params, query=query, key=key, value=value, mask=None)
    np.testing.assert_allclose(np.asarray(out_nm), np.asarray(ref_nm),
                               rtol=RTOL, atol=ATOL)

    # 3) self-attention fast path (fused QKV GEMM)
    out_sa = multi_head_attention(params, query=query, key=query, value=query,
                                  mask=mask)
    out_sa = jax.block_until_ready(out_sa)
    ref_sa = reference_mha(params, query=query, key=query, value=query, mask=mask)
    np.testing.assert_allclose(np.asarray(out_sa), np.asarray(ref_sa),
                               rtol=RTOL, atol=ATOL)

    print("KERNEL_OK")
</pallas_src>

<mosaic_0001>
module attributes {stable_mosaic.version = 11 : i64} {
  func.func @_linear_kernel(%arg0: i32, %arg1: i32, %arg2: i32, %arg3: memref<16x32xbf16, #tpu.memory_space<vmem>>, %arg4: memref<32x32xbf16, #tpu.memory_space<vmem>>, %arg5: memref<1x32xf32, #tpu.memory_space<vmem>>, %arg6: memref<16x32xbf16, #tpu.memory_space<vmem>>, %arg7: memref<16x32xf32, #tpu.memory_space<vmem>>) attributes {dimension_semantics = [#tpu.dimension_semantics<parallel>, #tpu.dimension_semantics<parallel>, #tpu.dimension_semantics<arbitrary>], iteration_bounds = array<i64: 1, 1, 1>, scalar_prefetch = 0 : i64, scratch_operands = 1 : i64, tpu.core_type = #tpu.core_type<tc>, window_params = [{transform_indices = @transform_0, window_bounds = array<i64: 16, 32>}, {transform_indices = @transform_1, window_bounds = array<i64: 32, 32>}, {transform_indices = @transform_2, window_bounds = array<i64: 1, 32>}, {transform_indices = @transform_3, window_bounds = array<i64: 16, 32>}]} {
    %c0_i32 = arith.constant 0 : i32
    %0 = arith.cmpi eq, %arg2, %c0_i32 : i32
    %1 = arith.extui %0 : i1 to i32
    %c0_i32_0 = arith.constant 0 : i32
    %2 = arith.cmpi ne, %1, %c0_i32_0 : i32
    scf.if %2 {
      %cst_10 = arith.constant 0.000000e+00 : f32
      %12 = vector.broadcast %cst_10 : f32 to vector<16x32xf32>
      %c0_11 = arith.constant 0 : index
      %c0_12 = arith.constant 0 : index
      %13 = vector.load %arg7[%c0_11, %c0_12] : memref<16x32xf32, #tpu.memory_space<vmem>>, vector<16x32xf32>
      tpu.vector_store %arg7[%c0_11, %c0_12], %12 {strides = array<i32>} : memref<16x32xf32, #tpu.memory_space<vmem>>, vector<16x32xf32>,
    } else {
    }
    %c0 = arith.constant 0 : index
    %c0_1 = arith.constant 0 : index
    %3 = vector.load %arg7[%c0, %c0_1] : memref<16x32xf32, #tpu.memory_space<vmem>>, vector<16x32xf32>
    %c0_2 = arith.constant 0 : index
    %c0_3 = arith.constant 0 : index
    %4 = vector.load %arg3[%c0_2, %c0_3] : memref<16x32xbf16, #tpu.memory_space<vmem>>, vector<16x32xbf16>
    %c0_4 = arith.constant 0 : index
    %c0_5 = arith.constant 0 : index
    %5 = vector.load %arg4[%c0_4, %c0_5] : memref<32x32xbf16, #tpu.memory_space<vmem>>, vector<32x32xbf16>
    %cst = arith.constant dense<0.000000e+00> : vector<16x32xf32>
    %6 = tpu.matmul %4, %5, %cst {dimension_numbers = #tpu.dot_dimension_numbers<[1], [0], [0], [1], [0, 0, 1, 1], [], []>} : vector<16x32xbf16>, vector<32x32xbf16>, vector<16x32xf32> -> vector<16x32xf32>
    %7 = arith.addf %3, %6 : vector<16x32xf32>
    %c0_6 = arith.constant 0 : index
    %c0_7 = arith.constant 0 : index
    %8 = vector.load %arg7[%c0_6, %c0_7] : memref<16x32xf32, #tpu.memory_space<vmem>>, vector<16x32xf32>
    tpu.vector_store %arg7[%c0_6, %c0_7], %7 {strides = array<i32>} : memref<16x32xf32, #tpu.memory_space<vmem>>, vector<16x32xf32>,
    %c0_i32_8 = arith.constant 0 : i32
    %9 = arith.cmpi eq, %arg2, %c0_i32_8 : i32
    %10 = arith.extui %9 : i1 to i32
    %c0_i32_9 = arith.constant 0 : i32
    %11 = arith.cmpi ne, %10, %c0_i32_9 : i32
    scf.if %11 {
      %c0_10 = arith.constant 0 : index
      %c0_11 = arith.constant 0 : index
      %12 = vector.load %arg7[%c0_10, %c0_11] : memref<16x32xf32, #tpu.memory_space<vmem>>, vector<16x32xf32>
      %c0_12 = arith.constant 0 : index
      %c0_13 = arith.constant 0 : index
      %13 = vector.load %arg5[%c0_12, %c0_13] : memref<1x32xf32, #tpu.memory_space<vmem>>, vector<1x32xf32>
      %14 = vector.broadcast %13 : vector<1x32xf32> to vector<16x32xf32>
      %15 = arith.addf %12, %14 : vector<16x32xf32>
      %16 = arith.truncf %15 : vector<16x32xf32> to vector<16x32xbf16>
      %c0_14 = arith.constant 0 : index
      %c0_15 = arith.constant 0 : index
      %17 = vector.load %arg6[%c0_14, %c0_15] : memref<16x32xbf16, #tpu.memory_space<vmem>>, vector<16x32xbf16>
      tpu.vector_store %arg6[%c0_14, %c0_15], %16 {strides = array<i32>} : memref<16x32xbf16, #tpu.memory_space<vmem>>, vector<16x32xbf16>,
    } else {
    }
    return
  }
  func.func @transform_0(%arg0: i32, %arg1: i32, %arg2: i32) -> (i32, i32) {
    %c0_i32 = arith.constant 0 : i32
    return %arg0, %arg2 : i32, i32
  }
  func.func @transform_1(%arg0: i32, %arg1: i32, %arg2: i32) -> (i32, i32) {
    %c0_i32 = arith.constant 0 : i32
    return %arg2, %arg1 : i32, i32
  }
  func.func @transform_2(%arg0: i32, %arg1: i32, %arg2: i32) -> (i32, i32) {
    %c0_i32 = arith.constant 0 : i32
    %c0_i32_0 = arith.constant 0 : i32
    return %c0_i32, %arg1 : i32, i32
  }
  func.func @transform_3(%arg0: i32, %arg1: i32, %arg2: i32) -> (i32, i32) {
    %c0_i32 = arith.constant 0 : i32
    return %arg0, %arg1 : i32, i32
  }
}

</mosaic_0001>

<llo_original>
// kernel: tpu_custom_call.1
$region0: #{tpu_custom_call.1}
  #allocation0 [shape = 'u32[]', space=smem, size = 0x4, offset = 0x4, fixed_abs, tag = 'smem constant byte address 0x4 - core index']
  #allocation1 [shape = 'u32[144,128]{1,0:T(1,128)}', space=vmem, size = 0x12000, scoped, tag = 'internal scratch']
  #allocation2 [shape = 'f32[16,32]{1,0:T(8,128)}', space=vmem, size = 0x2000, scoped, tag = 'scratch operand']
  %s0 = inlined_call_operand.hbm [shape: bf16[16,32], index: 0, kind: input, shape index: {}]
  %s1 = inlined_call_operand.hbm [shape: bf16[32,32], index: 1, kind: input, shape index: {}]
  %s2 = inlined_call_operand.vmem [shape: f32[1,32], index: 2, kind: input, shape index: {}]
  %s3 = inlined_call_operand.hbm [shape: bf16[16,32], index: 3, kind: output, shape index: {}]
  %s4 = sld [smem:[#allocation0]]
  $region38: #{tpu_custom_call.1} parent=0
    _
  %s6 = ssub.s32 1, %s4
  %s7 = scalar_select 0, %s6, %s4
  $region1: #{tpu_custom_call.1} parent=0
    #allocation3 [shape = 'u8[4096]{0}', space=vmem, size = 0x1000, scoped, tag = 'input window, operand 0, single buffered']
    #allocation4 [shape = 's32[1]{0}', space=sflag, size = 0x4, scoped, tag = 'scoped memory for tpu_custom_call.1']
    #allocation5 [shape = 's32[1]{0}', space=sflag, size = 0x4, scoped, tag = 'scoped memory for tpu_custom_call.1']
    #allocation6 [shape = 'u8[8192]{0}', space=vmem, size = 0x2000, scoped, tag = 'input window, operand 1, single buffered']
    #allocation7 [shape = 's32[1]{0}', space=sflag, size = 0x4, scoped, tag = 'scoped memory for tpu_custom_call.1']
    #allocation8 [shape = 'u8[4096]{0}', space=vmem, size = 0x1000, scoped, tag = 'output window, operand 0, single buffered']
    %8 = vsyncpa [#allocation4], 0
    %9 = vsyncpa [#allocation7], 0
    %10 = vsyncpa [#allocation5], 0
    // Predicated region
    $region2: #{tpu_custom_call.1} parent=1 // pred_check
      _
    $region3: #{tpu_custom_call.1} parent=1 // pred_check_branch
      %12 = sbr.rel (0) target = $region5
    $region4: #{tpu_custom_call.1} parent=1 // pred_region
      %s14 = ssub.s32 128, 128
      %15 = vsyncadd [#allocation4], %s14
      %s16 = sshll.u32 [#allocation3], 4
      %s17 = int_to_ptr.vmem [resolvable:$true] %s16
      %22 = dma.hbm_to_vmem [thread:$0]  %s0, 128, %s17, [#allocation4], 64, 64, 4
    $region5: #{tpu_custom_call.1} parent=1 // pred_fallthru
      _
    // Predicated region
    $region6: #{tpu_custom_call.1} parent=1 // pred_check
      _
    $region7: #{tpu_custom_call.1} parent=1 // pred_check_branch
      %24 = sbr.rel (0) target = $region9
    $region8: #{tpu_custom_call.1} parent=1 // pred_region
      %s26 = ssub.s32 256, 256
      %27 = vsyncadd [#allocation7], %s26
      %s28 = sshll.u32 [#allocation6], 4
      %s29 = int_to_ptr.vmem [resolvable:$true] %s28
      %34 = dma.hbm_to_vmem [thread:$0]  %s1, 256, %s29, [#allocation7], 64, 64, 4
    $region9: #{tpu_custom_call.1} parent=1 // pred_fallthru
      _
    // Predicated region
    $region10: #{tpu_custom_call.1} parent=1 // pred_check
      _
    $region11: #{tpu_custom_call.1} parent=1 // pred_check_branch
      %36 = sbr.rel (0) target = $region13
    $region12: #{tpu_custom_call.1} parent=1 // pred_region
      _
    $region13: #{tpu_custom_call.1} parent=1 // pred_fallthru
      _
    // Predicated region
    $region14: #{tpu_custom_call.1} parent=1 // pred_check
      _
    $region15: #{tpu_custom_call.1} parent=1 // pred_check_branch
      %38 = sbr.rel (0) target = $region17
    $region16: #{tpu_custom_call.1} parent=1 // pred_region
      %39 = dma.done [#allocation4], 128
    $region17: #{tpu_custom_call.1} parent=1 // pred_fallthru
      _
    // Predicated region
    $region18: #{tpu_custom_call.1} parent=1 // pred_check
      _
    $region19: #{tpu_custom_call.1} parent=1 // pred_check_branch
      %41 = sbr.rel (0) target = $region21
    $region20: #{tpu_custom_call.1} parent=1 // pred_region
      %42 = dma.done [#allocation7], 256
    $region21: #{tpu_custom_call.1} parent=1 // pred_fallthru
      _
    %p44 = scmp.eq.s32.totalorder 0, 0
    // Predicated region
    $region22: #{tpu_custom_call.1} parent=1 // pred_check
      %p45 = pneg %p44
    $region23: #{tpu_custom_call.1} parent=1 // pred_check_branch
      %47 = sbr.rel (%p45) target = $region25
    $region24: #{tpu_custom_call.1} parent=1 // pred_region
      %vm48 = vcmask 261120
      %49 = vst.msk [vmem:[#allocation2] sm:$0xff] %vm48, 0.0
      %50 = vst.msk [vmem:[#allocation2 + $0x8] sm:$0xff] %vm48, 0.0
    $region25: #{tpu_custom_call.1} parent=1 // pred_fallthru
      _
    %v51 = vld [vmem:[#allocation2] sm:$0xff]
    %v52 = vld [vmem:[#allocation2 + $0x8] sm:$0xff]
    %v53 = vld [vmem:[#allocation3] sm:$0xf]
    %v54 = vld [vmem:[#allocation3 + $0x4] sm:$0xf]
    %v55 = vld [vmem:[#allocation6] sm:$0xf]
    %v56 = vld [vmem:[#allocation6 + $0x4] sm:$0xf]
    %v57 = vld [vmem:[#allocation6 + $0x8] sm:$0xf]
    %v58 = vld [vmem:[#allocation6 + $0xc] sm:$0xf]
    %v61 = vunpack.c.l.b16 %v53
    %v62 = vunpack.c.l.b16 %v54
    %v63 = vpack.c.b16 %v62, %v61
    %v68 = vunpack.c.l.b16 %v55
    %v69 = vunpack.c.l.b16 %v56
    %v70 = vunpack.c.l.b16 %v57
    %v71 = vunpack.c.l.b16 %v58
    %v72 = vpack.c.b16 %v69, %v68
    %v73 = vpack.c.b16 %v71, %v70
    %vm76 = vcmask 261120
    %v78 = vsel %vm76, %v63, 0
    %80 = vmatprep.subr.bf16.mxu0 0
    %81 = vmatpush1.bf16.msra.mxu0 %v72
    %82 = vmatprep.subr.bf16.mxu0 0
    %83 = vmatpush1.bf16.msra.mxu0 %v73
    %84 = vmatprep.subr.bf16.mxu0 0
    %85 = vmatpush1.bf16.msra.mxu0 0
    %86 = vmatprep.subr.bf16.mxu0 0
    %87 = vmatpush1.bf16.msra.mxu0 0
    %88 = vmatprep.subr.bf16.mxu0 0
    %89 = vmatpush1.bf16.msra.mxu0 0
    %90 = vmatprep.subr.bf16.mxu0 0
    %91 = vmatpush1.bf16.msra.mxu0 0
    %92 = vmatprep.subr.bf16.mxu0 0
    %93 = vmatpush1.bf16.msra.mxu0 0
    %94 = vmatprep.subr.bf16.mxu0 0
    %95 = vmatpush1.bf16.msra.mxu0 0
    %96 = vmatprep.subr.bf16.mxu0 0
    %97 = vmatpush1.bf16.msra.mxu0 0
    %98 = vmatprep.subr.bf16.mxu0 0
    %99 = vmatpush1.bf16.msra.mxu0 0
    %100 = vmatprep.subr.bf16.mxu0 0
    %101 = vmatpush1.bf16.msra.mxu0 0
    %102 = vmatprep.subr.bf16.mxu0 0
    %103 = vmatpush1.bf16.msra.mxu0 0
    %104 = vmatprep.subr.bf16.mxu0 0
    %105 = vmatpush1.bf16.msra.mxu0 0
    %106 = vmatprep.subr.bf16.mxu0 0
    %107 = vmatpush1.bf16.msra.mxu0 0
    %108 = vmatprep.subr.bf16.mxu0 0
    %109 = vmatpush1.bf16.msra.mxu0 0
    %110 = vmatprep.subr.bf16.mxu0 0
    %111 = vmatpush1.bf16.msra.mxu0 0
    %112 = vmatprep.mubr.bf16.mxu0 0
    %113 = vmatmul.mubr.bf16.gmra.mrb[0].mxu0 %v78
    %v114 = vpop.f32.mrb[0].mxu0
    %v115 = vadd.f32 0.0, %v114
    %v116 = vpop.f32.mrb[0].mxu0
    %v117 = vpop.f32.mrb[0].mxu0
    %v118 = vadd.f32 0.0, %v117
    %v119 = vpop.f32.mrb[0].mxu0
    %120 = vdwg.mxu0
    %v121 = vadd.f32 %v51, %v115
    %v122 = vadd.f32 %v52, %v118
    %123 = vst.msk [vmem:[#allocation2] sm:$0xff] %vm76, %v121
    %124 = vst.msk [vmem:[#allocation2 + $0x8] sm:$0xff] %vm76, %v122
    // Predicated region
    $region26: #{tpu_custom_call.1} parent=1 // pred_check
      %p125 = pneg %p44
    $region27: #{tpu_custom_call.1} parent=1 // pred_check_branch
      %127 = sbr.rel (%p125) target = $region29
    $region28: #{tpu_custom_call.1} parent=1 // pred_region
      %v128 = vld [vmem:[#allocation2] sm:$0xff]
      %v129 = vld [vmem:[#allocation2 + $0x8] sm:$0xff]
      %v130 = vld [vmem:[%s2] sm:$0x1]
      %v132 = vlaneseq
      %v133 = vshrl.u32 %v132, 7
      %v134 = vsub.s32 0, %v133
      %v135 = vrot.slane %v130, %v134
      %v137 = vadd.f32 %v128, %v135
      %v138 = vadd.f32 %v129, %v135
      %v139 = vpack.c.bf16 %v138, %v137
      %v141 = vunpack.c.l.b16 %v139
      %v142 = vunpack.c.h.b16 %v139
      %v143 = vpack.c.b16 %v141, %v141
      %v144 = vpack.c.b16 %v142, %v142
      %vm147 = vcmask 257024
      %148 = vst.msk [vmem:[#allocation8] sm:$0xf] %vm147, %v143
      %149 = vst.msk [vmem:[#allocation8 + $0x4] sm:$0xf] %vm147, %v144
    $region29: #{tpu_custom_call.1} parent=1 // pred_fallthru
      _
    // Predicated region
    $region30: #{tpu_custom_call.1} parent=1 // pred_check
      _
    $region31: #{tpu_custom_call.1} parent=1 // pred_check_branch
      %151 = sbr.rel (0) target = $region33
    $region32: #{tpu_custom_call.1} parent=1 // pred_region
      %s153 = ssub.s32 128, 128
      %154 = vsyncadd [#allocation5], %s153
      %s155 = sshll.u32 [#allocation8], 4
      %s156 = int_to_ptr.vmem [resolvable:$true] %s155
      %161 = dma.vmem_to_hbm [thread:$0]  %s156, 128, %s3, [#allocation5], 64, 64, 4
    $region33: #{tpu_custom_call.1} parent=1 // pred_fallthru
      _
    // Predicated region
    $region34: #{tpu_custom_call.1} parent=1 // pred_check
      _
    $region35: #{tpu_custom_call.1} parent=1 // pred_check_branch
      %163 = sbr.rel (0) target = $region37
    $region36: #{tpu_custom_call.1} parent=1 // pred_region
      %164 = dma.done [#allocation5], 128
    $region37: #{tpu_custom_call.1} parent=1 // pred_fallthru
      _
    %165 = vsyncpa [#allocation4], 1
    %166 = vsyncpa [#allocation7], 1
    %167 = vsyncpa [#allocation5], 1

</llo_original>
